<compile_context>
chip_gen: v7x
topology: tpu7x:2x2x1
jax: 0.10.0
libtpu: 0.0.40
codegen_flags: <defaults>
</compile_context>

<pallas_src>
import jax
import jax.numpy as jnp
from jax import lax
from jax.experimental import pallas as pl
from jax.experimental.pallas import tpu as pltpu


def _graphnorm_kernel(inv_norm_ref, feat_ref, out_ref):
    # inv_norm_ref: (TM, 1) f32 column; feat_ref / out_ref: (TM, TN).
    # Pure mem-bound elementwise multiply; the f32 column broadcasts across
    # the lane (feature) dim and the product is cast back on store.
    out_ref[...] = (feat_ref[...] * inv_norm_ref[...]).astype(out_ref.dtype)


def _round_up(x, m):
    return ((x + m - 1) // m) * m


def graph_norm(feature, node_id, *, num_graphs=None, tm=512, tn=1024,
               donate_feature=False):
    """GraphNorm forward.

    feature:   (N, F) array.
    node_id:   (N,) int array, graph index per node.
    num_graphs: static number of graphs (defaults to N as a safe upper bound).
    """
    N, F = feature.shape
    node_id = node_id.astype(jnp.int32)
    if num_graphs is None:
        num_graphs = N  # safe static upper bound

    # O(num_graphs) precompute (fused by XLA when this fn runs under jit):
    # nodes-per-graph count -> rsqrt -> gather back per node. Kept in f32.
    counts = jax.ops.segment_sum(
        jnp.ones((N,), jnp.float32), node_id, num_segments=num_graphs)
    inv_norm = lax.rsqrt(counts)[node_id].reshape(N, 1)
    # NOTE: the PyTorch module truncates to min(norm.size(0), feature.size(0));
    # node_id and feature share N here, so no trim is needed.

    # Always (8,128)-aligned tiles; clamp to the aligned array extent so small
    # shapes don't over-allocate, never an unaligned full-dim fallback.
    TM = min(tm, _round_up(N, 8))
    TN = min(tn, _round_up(F, 128))
    grid = (pl.cdiv(N, TM), pl.cdiv(F, TN))  # edge tiles are masked by Pallas

    kwargs = {}
    if donate_feature:
        # feature (input 1) aliases output 0: halves the op's HBM footprint
        # when the caller no longer needs the un-normalized features.
        kwargs["input_output_aliases"] = {1: 0}

    return pl.pallas_call(
        _graphnorm_kernel,
        out_shape=jax.ShapeDtypeStruct((N, F), feature.dtype),
        grid=grid,
        in_specs=[
            pl.BlockSpec((TM, 1), lambda i, j: (i, 0)),    # inv_norm column (f32)
            pl.BlockSpec((TM, TN), lambda i, j: (i, j)),   # feature tile
        ],
        out_specs=pl.BlockSpec((TM, TN), lambda i, j: (i, j)),
        compiler_params=pltpu.CompilerParams(
            dimension_semantics=("parallel", "parallel"),  # megacore sharding
        ),
        **kwargs,
    )(inv_norm, feature)


if __name__ == "__main__":
    key = jax.random.PRNGKey(0)
    num_nodes, feature_size = 8, 32
    feature = jax.random.normal(key, (num_nodes, feature_size), dtype=jnp.float32)
    # two graphs: graph 0 has 3 nodes, graph 1 has 5 nodes
    node_id = jnp.array([0, 0, 0, 1, 1, 1, 1, 1], dtype=jnp.int32)

    # jit the whole wrapper so the O(num_graphs) precompute fuses with the
    # pallas_call instead of launching separate tiny XLA kernels.
    gn = jax.jit(graph_norm, static_argnames=("num_graphs", "tm", "tn",
                                              "donate_feature"))
    out = gn(feature, node_id, num_graphs=2)
    jax.block_until_ready(out)

    # pure-JAX reference check (matches the PyTorch GraphNorm forward)
    counts = jax.ops.segment_sum(jnp.ones((num_nodes,), jnp.float32), node_id,
                                 num_segments=2)
    ref = feature / jnp.sqrt(counts[node_id])[:, None]
    assert jnp.allclose(out, ref, rtol=1e-5, atol=1e-6)

    print("KERNEL_OK")
</pallas_src>

<mosaic_0001>
module attributes {stable_mosaic.version = 11 : i64} {
  func.func @_graphnorm_kernel(%arg0: i32, %arg1: i32, %arg2: memref<8x1xf32, #tpu.memory_space<vmem>>, %arg3: memref<8x128xf32, #tpu.memory_space<vmem>>, %arg4: memref<8x128xf32, #tpu.memory_space<vmem>>) attributes {dimension_semantics = [#tpu.dimension_semantics<parallel>, #tpu.dimension_semantics<parallel>], iteration_bounds = array<i64: 1, 1>, scalar_prefetch = 0 : i64, scratch_operands = 0 : i64, tpu.core_type = #tpu.core_type<tc>, window_params = [{transform_indices = @transform_0, window_bounds = array<i64: 8, 1>}, {transform_indices = @transform_1, window_bounds = array<i64: 8, 128>}, {transform_indices = @transform_2, window_bounds = array<i64: 8, 128>}]} {
    %c0 = arith.constant 0 : index
    %c0_0 = arith.constant 0 : index
    %0 = vector.load %arg3[%c0, %c0_0] : memref<8x128xf32, #tpu.memory_space<vmem>>, vector<8x128xf32>
    %c0_1 = arith.constant 0 : index
    %c0_2 = arith.constant 0 : index
    %1 = vector.load %arg2[%c0_1, %c0_2] : memref<8x1xf32, #tpu.memory_space<vmem>>, vector<8x1xf32>
    %2 = vector.broadcast %1 : vector<8x1xf32> to vector<8x128xf32>
    %3 = arith.mulf %0, %2 : vector<8x128xf32>
    %c0_3 = arith.constant 0 : index
    %c0_4 = arith.constant 0 : index
    %4 = vector.load %arg4[%c0_3, %c0_4] : memref<8x128xf32, #tpu.memory_space<vmem>>, vector<8x128xf32>
    tpu.vector_store %arg4[%c0_3, %c0_4], %3 {strides = array<i32>} : memref<8x128xf32, #tpu.memory_space<vmem>>, vector<8x128xf32>,
    return
  }
  func.func @transform_0(%arg0: i32, %arg1: i32) -> (i32, i32) {
    %c0_i32 = arith.constant 0 : i32
    %c0_i32_0 = arith.constant 0 : i32
    return %arg0, %c0_i32 : i32, i32
  }
  func.func @transform_1(%arg0: i32, %arg1: i32) -> (i32, i32) {
    %c0_i32 = arith.constant 0 : i32
    return %arg0, %arg1 : i32, i32
  }
  func.func @transform_2(%arg0: i32, %arg1: i32) -> (i32, i32) {
    %c0_i32 = arith.constant 0 : i32
    return %arg0, %arg1 : i32, i32
  }
}

</mosaic_0001>

<llo_original>
// kernel: graph_norm.1
$region0: #{graph_norm.1}
  #allocation0 [shape = 'u32[]', space=smem, size = 0x4, offset = 0x4, fixed_abs, tag = 'smem constant byte address 0x4 - core index']
  #allocation1 [shape = 'u32[144,128]{1,0:T(1,128)}', space=vmem, size = 0x12000, scoped, tag = 'internal scratch']
  %s0 = inlined_call_operand.vmem [shape: f32[8,1], index: 0, kind: input, shape index: {}]
  %s1 = inlined_call_operand.vmem [shape: f32[8,32], index: 1, kind: input, shape index: {}]
  %s2 = inlined_call_operand.hbm [shape: f32[8,32], index: 2, kind: output, shape index: {}]
  %s3 = sld [smem:[#allocation0]]
  $region18: #{graph_norm.1} parent=0
    _
  %s5 = ssub.s32 1, %s3
  %s6 = scalar_select 0, %s5, %s3
  $region1: #{graph_norm.1} parent=0
    #allocation2 [shape = 'u8[4096]{0}', space=vmem, size = 0x1000, scoped, tag = 'output window, operand 0, single buffered']
    #allocation3 [shape = 's32[1]{0}', space=sflag, size = 0x4, scoped, tag = 'scoped memory for graph_norm.1']
    %7 = vsyncpa [#allocation3], 0
    // Predicated region
    $region2: #{graph_norm.1} parent=1 // pred_check
      _
    $region3: #{graph_norm.1} parent=1 // pred_check_branch
      %9 = sbr.rel (0) target = $region5
    $region4: #{graph_norm.1} parent=1 // pred_region
      _
    $region5: #{graph_norm.1} parent=1 // pred_fallthru
      _
    // Predicated region
    $region6: #{graph_norm.1} parent=1 // pred_check
      _
    $region7: #{graph_norm.1} parent=1 // pred_check_branch
      %11 = sbr.rel (0) target = $region9
    $region8: #{graph_norm.1} parent=1 // pred_region
      _
    $region9: #{graph_norm.1} parent=1 // pred_fallthru
      _
    %v12 = vld [vmem:[%s1] sm:$0xff]
    %v13 = vld [vmem:[%s0] sm:$0xff]
    %15 = vset.pattern.permute.xlu0 0
    %16 = vperm.xlu0 %15, %v13
    %v17 = vpop.permute.xlu0 %16
    %v19 = vmul.f32 %v12, %v17
    %20 = vst [vmem:[#allocation2] sm:$0xff] %v19
    // Predicated region
    $region10: #{graph_norm.1} parent=1 // pred_check
      _
    $region11: #{graph_norm.1} parent=1 // pred_check_branch
      %22 = sbr.rel (0) target = $region13
    $region12: #{graph_norm.1} parent=1 // pred_region
      %s24 = ssub.s32 128, 128
      %25 = vsyncadd [#allocation3], %s24
      %s27 = sshll.u32 [#allocation2], 4
      %s28 = int_to_ptr.vmem [resolvable:$true] %s27
      %30 = dma.vmem_to_hbm [thread:$0]  %s28, 128, %s2, [#allocation3]
    $region13: #{graph_norm.1} parent=1 // pred_fallthru
      _
    // Predicated region
    $region14: #{graph_norm.1} parent=1 // pred_check
      _
    $region15: #{graph_norm.1} parent=1 // pred_check_branch
      %32 = sbr.rel (0) target = $region17
    $region16: #{graph_norm.1} parent=1 // pred_region
      %33 = dma.done [#allocation3], 128
    $region17: #{graph_norm.1} parent=1 // pred_fallthru
      _
    %34 = vsyncpa [#allocation3], 1

</llo_original>
